<compile_context>
chip_gen: v6e
topology: v6e:2x2x1
jax: 0.10.0
libtpu: 0.0.40
codegen_flags: <defaults>
</compile_context>

<pallas_src>
import jax
import jax.numpy as jnp
from jax.experimental import pallas as pl
from jax.experimental.pallas import tpu as pltpu


# ---------------------------------------------------------------------------
# Production forward path: the module's forward is an identity read-out of
# its parameters, so the fastest correct implementation is no kernel at all.
# ---------------------------------------------------------------------------
def rk_forward(logits, eta):
    """RKModel.forward(): returns (logits, eta) unchanged (no kernel)."""
    return logits, eta


# ---------------------------------------------------------------------------
# Optional Pallas path (fusion anchor only; pure overhead as an identity).
# ---------------------------------------------------------------------------
def _rk_identity_kernel(logits_ref, out_ref):
    # Identity "compute": forward just returns the parameters.
    # NOTE: this copy must remain while input_output_aliases={0: 0} is set —
    # aliasing removes only the output HBM allocation, not the writeback DMA.
    # TODO(synk): if downstream consumers (e.g. softmax(logits), sigmoid(eta),
    # mixture-weight normalization) are ever needed, fuse them here and size
    # the block to the real consumer's tile instead of shipping an identity.
    out_ref[...] = logits_ref[...]


@jax.jit
def rk_forward_pallas(logits, eta):
    """Pallas implementation of RKModel.forward().

    logits: f32[num_components], eta: f32 scalar.  logits go through a single
    full-array (1, n) VMEM block (no padding, no pack); eta is returned
    untouched by the wrapper (it never transits the kernel).
    """
    n = logits.shape[0]
    logits_2d = logits.reshape(1, n)  # full-array block; exempt from (8,128)

    out = pl.pallas_call(
        _rk_identity_kernel,
        out_shape=jax.ShapeDtypeStruct((1, n), logits.dtype),
        in_specs=[pl.BlockSpec(memory_space=pltpu.VMEM)],
        out_specs=pl.BlockSpec(memory_space=pltpu.VMEM),
        # P8: alias output onto the input buffer (saves the output HBM alloc
        # only; the in-kernel copy above is still required).
        input_output_aliases={0: 0},
    )(logits_2d)

    return out.reshape(n), eta


def init_rk_params(num_components):
    """Deterministic parameter init matching RKModel.__init__."""
    # nn.init.constant_(torch.empty(num_components), 0.5)
    logits = jnp.full((num_components,), 0.5, dtype=jnp.float32)
    # nn.Parameter(torch.tensor(0.1))
    eta = jnp.asarray(0.1, dtype=jnp.float32)
    return logits, eta


if __name__ == "__main__":
    # PRNGKey created for convention; parameters are deterministic constants.
    _ = jax.random.PRNGKey(0)

    num_components = 8
    logits, eta = init_rk_params(num_components)

    # Production path (recommended): pure identity, no kernel launch.
    fast_logits, fast_eta = rk_forward(logits, eta)

    # Pallas path (fusion anchor): run once and block.
    out_logits, out_eta = rk_forward_pallas(logits, eta)
    jax.block_until_ready(out_logits)
    jax.block_until_ready(out_eta)

    assert out_logits.shape == (num_components,)
    assert out_eta.shape == ()
    assert out_eta.dtype == eta.dtype  # eta never round-trips through dtypes
    assert bool(jnp.all(out_logits == 0.5))
    assert bool(jnp.isclose(out_eta, 0.1))
    assert bool(jnp.all(fast_logits == out_logits))
    assert bool(jnp.isclose(fast_eta, out_eta))

    print("KERNEL_OK")
</pallas_src>

<mosaic_0001>
module attributes {stable_mosaic.version = 11 : i64} {
  func.func @_rk_identity_kernel(%arg0: memref<1x8xf32, #tpu.memory_space<vmem>>, %arg1: memref<1x8xf32, #tpu.memory_space<vmem>>) attributes {dimension_semantics = [], scalar_prefetch = 0 : i64, scratch_operands = 0 : i64, tpu.core_type = #tpu.core_type<tc>} {
    %c0 = arith.constant 0 : index
    %c0_0 = arith.constant 0 : index
    %0 = vector.load %arg0[%c0, %c0_0] : memref<1x8xf32, #tpu.memory_space<vmem>>, vector<1x8xf32>
    %c0_1 = arith.constant 0 : index
    %c0_2 = arith.constant 0 : index
    %1 = vector.load %arg1[%c0_1, %c0_2] : memref<1x8xf32, #tpu.memory_space<vmem>>, vector<1x8xf32>
    tpu.vector_store %arg1[%c0_1, %c0_2], %0 {strides = array<i32>} : memref<1x8xf32, #tpu.memory_space<vmem>>, vector<1x8xf32>,
    return
  }
}

</mosaic_0001>

<llo_original>
// kernel: rk_forward_pallas.1
$region0: #{rk_forward_pallas.1}
  #allocation0 [shape = 'u32[]', space=smem, size = 0x4, offset = 0x4, fixed_abs, tag = 'smem constant byte address 0x4 - core index']
  #allocation1 [shape = 'u32[144,128]{1,0:T(1,128)}', space=vmem, size = 0x12000, scoped, tag = 'internal scratch']
  %s0 = inlined_call_operand.vmem [shape: f32[1,8], index: 0, kind: input, shape index: {}, may-alias: {0,1}]
  %s1 = inlined_call_operand.vmem [shape: f32[1,8], index: 1, kind: output, shape index: {}, may-alias: {0,1}]
  %s2 = sld [smem:[#allocation0]]
  $region14: #{rk_forward_pallas.1} parent=0
    _
  %s4 = ssub.s32 1, %s2
  %s5 = scalar_select 0, %s4, %s2
  // Predicated region
  $region2: #{rk_forward_pallas.1} parent=0 // pred_check
    _
  $region3: #{rk_forward_pallas.1} parent=0 // pred_check_branch
    %7 = sbr.rel (0) target = $region5
  $region4: #{rk_forward_pallas.1} parent=0 // pred_region
    _
  $region5: #{rk_forward_pallas.1} parent=0 // pred_fallthru
    _
  %v8 = vld [vmem:[%s0] sm:$0x1]
  %vm9 = vcmask 57344
  %10 = vst.msk [vmem:[%s1] sm:$0x1] %vm9, %v8
  // Predicated region
  $region6: #{rk_forward_pallas.1} parent=0 // pred_check
    _
  $region7: #{rk_forward_pallas.1} parent=0 // pred_check_branch
    %12 = sbr.rel (0) target = $region9
  $region8: #{rk_forward_pallas.1} parent=0 // pred_region
    _
  $region9: #{rk_forward_pallas.1} parent=0 // pred_fallthru
    _
  // Predicated region
  $region10: #{rk_forward_pallas.1} parent=0 // pred_check
    _
  $region11: #{rk_forward_pallas.1} parent=0 // pred_check_branch
    %14 = sbr.rel (0) target = $region13
  $region12: #{rk_forward_pallas.1} parent=0 // pred_region
    _
  $region13: #{rk_forward_pallas.1} parent=0 // pred_fallthru
    _

</llo_original>
